<compile_context>
chip_gen: v6e
topology: v6e:2x2x1
jax: 0.10.0
libtpu: 0.0.40
codegen_flags: <defaults>
</compile_context>

<pallas_src>
import functools

import jax
import jax.numpy as jnp
from jax.experimental import pallas as pl
from jax.experimental.pallas import tpu as pltpu


def se_kernel(x_ref, w1_ref, w2_ref, o_ref, *, inv_hw):
    # x_ref: (bb, C, HW)   w1_ref: (C, Cr)   w2_ref: (Cr, C)   o_ref: (bb, C, HW)
    x = x_ref[...]                                               # native dtype

    # squeeze: global average pool, f32 accumulation, no materialized f32 copy
    # of the slab. inv_hw is a static Python constant (true 1/(H*W)).
    y = jnp.sum(x, axis=-1, dtype=jnp.float32) * inv_hw          # (bb, C) f32

    # excite: Linear(C->Cr, no bias) + ReLU, Linear(Cr->C, no bias) + Sigmoid.
    h = jnp.maximum(
        jnp.dot(y, w1_ref[...], preferred_element_type=jnp.float32), 0.0)
    s = jax.nn.sigmoid(
        jnp.dot(h, w2_ref[...], preferred_element_type=jnp.float32))

    # fold the residual: x * s + x == x * (1 + s); +1 happens on the tiny
    # (bb, C) vector, full-tile multiply stays in input dtype.
    scale = (1.0 + s).astype(x.dtype)                            # (bb, C)
    o_ref[...] = x * scale[:, :, None]


def _vmem_capacity_bytes():
    try:
        return int(pltpu.get_tpu_info().vmem_capacity_bytes)
    except Exception:
        return 64 * 1024 * 1024  # conservative (v7x-sized) fallback


def _pick_bb(B, C, hw, itemsize, vmem_cap):
    """Pick samples-per-block: ~1-4 MiB blocks, divides B, grid >= 2 if B >= 2."""
    # Budget for 4 double-buffered x blocks (2 in + 2 out) under ~75% of VMEM,
    # leaving headroom for weights / f32 temps / compiler scratch.
    per_block_budget = max(1, (int(0.75 * vmem_cap)) // 4)
    target = min(per_block_budget, 4 * 1024 * 1024)
    sample_bytes = max(1, C * hw * itemsize)
    bb = max(1, min(B, target // sample_bytes))
    if B >= 2:
        # keep at least 2 grid steps so v7x megacore can shard the batch axis.
        bb = min(bb, max(1, B // 2))
    # largest divisor of B not exceeding bb -> no ragged last block.
    while B % bb != 0:
        bb -= 1
    return bb


@jax.jit
def se_layer(x_nchw, w1_t, w2_t):
    """x_nchw: (B, C, H, W); w1_t: (C, Cr); w2_t: (Cr, C). Returns (B, C, H, W)."""
    B, C, H, W = x_nchw.shape
    Cr = w1_t.shape[1]
    hw = H * W
    itemsize = jnp.dtype(x_nchw.dtype).itemsize

    x_flat = x_nchw.reshape(B, C, hw)

    vmem_cap = _vmem_capacity_bytes()
    bb = _pick_bb(B, C, hw, itemsize, vmem_cap)
    grid = (B // bb,)

    block_bytes = bb * C * hw * itemsize
    weight_bytes = 2 * (C * Cr * 4) * 2          # w1 + w2, double-buffered
    # 2 in + 2 out double-buffered x blocks + weights + headroom, capped at
    # ~75% of this generation's physical VMEM.
    vmem_bytes = int(min(int(0.75 * vmem_cap),
                         max(4 * 1024 * 1024,
                             4 * block_bytes + weight_bytes + (2 << 20))))
    # TODO(synk): if a single-sample slab (C*hw*itemsize) ever exceeds the
    # per-block budget (earlier on v7x's 64 MiB than on v5e/v6e's 128 MiB),
    # split into a pool+MLP kernel followed by an HW-tiled scale kernel.

    cost = pl.CostEstimate(
        flops=2 * B * C * hw + 4 * B * C * Cr,
        transcendentals=B * C,
        bytes_accessed=2 * B * C * hw * itemsize + 2 * C * Cr * 4,
    )

    out = pl.pallas_call(
        functools.partial(se_kernel, inv_hw=1.0 / float(hw)),
        out_shape=jax.ShapeDtypeStruct((B, C, hw), x_nchw.dtype),
        grid=grid,
        in_specs=[
            pl.BlockSpec((bb, C, hw), lambda b: (b, 0, 0)),  # batch-blocked slab
            pl.BlockSpec((C, Cr), lambda b: (0, 0)),         # resident weights
            pl.BlockSpec((Cr, C), lambda b: (0, 0)),
        ],
        out_specs=pl.BlockSpec((bb, C, hw), lambda b: (b, 0, 0)),
        cost_estimate=cost,
        compiler_params=pltpu.CompilerParams(
            dimension_semantics=("parallel",),
            vmem_limit_bytes=vmem_bytes,
        ),
    )(x_flat, w1_t, w2_t)

    return out.reshape(B, C, H, W)


def se_layer_ref(x, w1_t, w2_t):
    """Pure-JAX reference matching the PyTorch forward."""
    y = jnp.mean(x, axis=(2, 3))                      # (B, C)
    h = jnp.maximum(y @ w1_t, 0.0)                    # (B, Cr)
    s = jax.nn.sigmoid(h @ w2_t)                      # (B, C)
    return x * s[:, :, None, None] + x


if __name__ == "__main__":
    B, C, reduction = 2, 4, 2
    Cr = C // reduction

    key = jax.random.PRNGKey(0)
    kx, k1, k2, kx2 = jax.random.split(key, 4)

    # PyTorch Linear weights are (out, in); store them pre-transposed (in, out)
    # so the kernel does y @ w.
    w1_t = jax.random.normal(k1, (C, Cr), dtype=jnp.float32) * (1.0 / jnp.sqrt(C))
    w2_t = jax.random.normal(k2, (Cr, C), dtype=jnp.float32) * (1.0 / jnp.sqrt(Cr))

    # Case 1: HW a multiple of 128 (16*16 = 256).
    x = jax.random.normal(kx, (B, C, 16, 16), dtype=jnp.float32)
    out = jax.block_until_ready(se_layer(x, w1_t, w2_t))
    ref = se_layer_ref(x, w1_t, w2_t)
    assert out.shape == x.shape
    assert jnp.allclose(out, ref, atol=1e-5, rtol=1e-5), "mismatch vs reference (256)"

    # Case 2: ragged HW (5*5 = 25; full-extent block, no padding, true-mean).
    x2 = jax.random.normal(kx2, (B, C, 5, 5), dtype=jnp.float32)
    out2 = jax.block_until_ready(se_layer(x2, w1_t, w2_t))
    ref2 = se_layer_ref(x2, w1_t, w2_t)
    assert out2.shape == x2.shape
    assert jnp.allclose(out2, ref2, atol=1e-5, rtol=1e-5), "mismatch vs reference (25)"

    print("KERNEL_OK")
</pallas_src>

<mosaic_0001>
module attributes {stable_mosaic.version = 11 : i64} {
  func.func @se_kernel(%arg0: i32, %arg1: memref<1x4x256xf32, #tpu.memory_space<vmem>>, %arg2: memref<4x2xf32, #tpu.memory_space<vmem>>, %arg3: memref<2x4xf32, #tpu.memory_space<vmem>>, %arg4: memref<1x4x256xf32, #tpu.memory_space<vmem>>) attributes {dimension_semantics = [#tpu.dimension_semantics<parallel>], iteration_bounds = array<i64: 2>, scalar_prefetch = 0 : i64, scratch_operands = 0 : i64, tpu.core_type = #tpu.core_type<tc>, window_params = [{transform_indices = @transform_0, window_bounds = array<i64: 1, 4, 256>}, {pipeline_mode = #tpu.pipeline_mode<synchronous>, transform_indices = @transform_1, window_bounds = array<i64: 4, 2>}, {pipeline_mode = #tpu.pipeline_mode<synchronous>, transform_indices = @transform_2, window_bounds = array<i64: 2, 4>}, {transform_indices = @transform_3, window_bounds = array<i64: 1, 4, 256>}]} {
    %c0 = arith.constant 0 : index
    %c0_0 = arith.constant 0 : index
    %c0_1 = arith.constant 0 : index
    %0 = vector.load %arg1[%c0, %c0_0, %c0_1] : memref<1x4x256xf32, #tpu.memory_space<vmem>>, vector<1x4x256xf32>
    %cst = arith.constant dense<0.000000e+00> : vector<1x4xf32>
    %1 = vector.multi_reduction <add>, %0, %cst [2] : vector<1x4x256xf32> to vector<1x4xf32>
    %cst_2 = arith.constant 3.906250e-03 : f32
    %2 = vector.broadcast %cst_2 : f32 to vector<1x4xf32>
    %3 = arith.mulf %1, %2 : vector<1x4xf32>
    %c0_3 = arith.constant 0 : index
    %c0_4 = arith.constant 0 : index
    %4 = vector.load %arg2[%c0_3, %c0_4] : memref<4x2xf32, #tpu.memory_space<vmem>>, vector<4x2xf32>
    %cst_5 = arith.constant dense<0.000000e+00> : vector<1x2xf32>
    %5 = tpu.matmul %3, %4, %cst_5 {dimension_numbers = #tpu.dot_dimension_numbers<[1], [0], [0], [1], [0, 0, 1, 1], [], []>} : vector<1x4xf32>, vector<4x2xf32>, vector<1x2xf32> -> vector<1x2xf32>
    %cst_6 = arith.constant 0.000000e+00 : f32
    %6 = vector.broadcast %cst_6 : f32 to vector<1x2xf32>
    %7 = arith.maximumf %5, %6 : vector<1x2xf32>
    %c0_7 = arith.constant 0 : index
    %c0_8 = arith.constant 0 : index
    %8 = vector.load %arg3[%c0_7, %c0_8] : memref<2x4xf32, #tpu.memory_space<vmem>>, vector<2x4xf32>
    %cst_9 = arith.constant dense<0.000000e+00> : vector<1x4xf32>
    %9 = tpu.matmul %7, %8, %cst_9 {dimension_numbers = #tpu.dot_dimension_numbers<[1], [0], [0], [1], [0, 0, 1, 1], [], []>} : vector<1x2xf32>, vector<2x4xf32>, vector<1x4xf32> -> vector<1x4xf32>
    %10 = arith.negf %9 : vector<1x4xf32>
    %11 = math.exp %10 : vector<1x4xf32>
    %cst_10 = arith.constant 1.000000e+00 : f32
    %12 = vector.broadcast %cst_10 : f32 to vector<1x4xf32>
    %13 = arith.addf %12, %11 : vector<1x4xf32>
    %14 = arith.divf %12, %13 : vector<1x4xf32>
    %cst_11 = arith.constant 1.000000e+00 : f32
    %15 = vector.broadcast %cst_11 : f32 to vector<1x4xf32>
    %16 = arith.addf %15, %14 : vector<1x4xf32>
    %17 = vector.shape_cast %16 : vector<1x4xf32> to vector<1x4x1xf32>
    %18 = vector.broadcast %17 : vector<1x4x1xf32> to vector<1x4x256xf32>
    %19 = arith.mulf %0, %18 : vector<1x4x256xf32>
    %c0_12 = arith.constant 0 : index
    %c0_13 = arith.constant 0 : index
    %c0_14 = arith.constant 0 : index
    %20 = vector.load %arg4[%c0_12, %c0_13, %c0_14] : memref<1x4x256xf32, #tpu.memory_space<vmem>>, vector<1x4x256xf32>
    tpu.vector_store %arg4[%c0_12, %c0_13, %c0_14], %19 {strides = array<i32>} : memref<1x4x256xf32, #tpu.memory_space<vmem>>, vector<1x4x256xf32>,
    return
  }
  func.func @transform_0(%arg0: i32) -> (i32, i32, i32) {
    %c0_i32 = arith.constant 0 : i32
    %c0_i32_0 = arith.constant 0 : i32
    %c0_i32_1 = arith.constant 0 : i32
    return %arg0, %c0_i32, %c0_i32_0 : i32, i32, i32
  }
  func.func @transform_1(%arg0: i32) -> (i32, i32) {
    %c0_i32 = arith.constant 0 : i32
    %c0_i32_0 = arith.constant 0 : i32
    %c0_i32_1 = arith.constant 0 : i32
    return %c0_i32, %c0_i32_0 : i32, i32
  }
  func.func @transform_2(%arg0: i32) -> (i32, i32) {
    %c0_i32 = arith.constant 0 : i32
    %c0_i32_0 = arith.constant 0 : i32
    %c0_i32_1 = arith.constant 0 : i32
    return %c0_i32, %c0_i32_0 : i32, i32
  }
  func.func @transform_3(%arg0: i32) -> (i32, i32, i32) {
    %c0_i32 = arith.constant 0 : i32
    %c0_i32_0 = arith.constant 0 : i32
    %c0_i32_1 = arith.constant 0 : i32
    return %arg0, %c0_i32, %c0_i32_0 : i32, i32, i32
  }
}

</mosaic_0001>

<llo_original>
// kernel: se_layer.1
$region0: #{se_layer.1}
  #allocation0 [shape = 'u32[]', space=smem, size = 0x4, offset = 0x4, fixed_abs, tag = 'smem constant byte address 0x4 - core index']
  #allocation1 [shape = 'u32[144,128]{1,0:T(1,128)}', space=vmem, size = 0x12000, scoped, tag = 'internal scratch']
  %s0 = inlined_call_operand.vmem [shape: f32[2,4,256], index: 0, kind: input, shape index: {}]
  %s1 = inlined_call_operand.vmem [shape: f32[4,2], index: 1, kind: input, shape index: {}]
  %s2 = inlined_call_operand.vmem [shape: f32[2,4], index: 2, kind: input, shape index: {}]
  %s3 = inlined_call_operand.vmem [shape: f32[2,4,256], index: 3, kind: output, shape index: {}]
  %s4 = sld [smem:[#allocation0]]
  $region45: #{se_layer.1} parent=0
    _
  %s6 = ssub.s32 1, %s4
  %s7 = scalar_select 0, %s6, %s4
  loop: start=0, step=1, limit=4
  $region2: #{se_layer.1} parent=0 // loop_pre_header
    _
  $region3: #{se_layer.1} parent=0 // loop_header
    %s9 = sphi 0, %s13
    %p10 = scmp.ge.s32.totalorder %s9, 4
    %s19 = sphi 0, %s21
    %s22 = sphi 0, %s19
    %s23 = sphi 0, %s22
    %s39 = sphi 0, %s23
    %s43 = sphi 0, %s43
    %s45 = sphi 0, %s43
    %s46 = sphi 0, %s45
    %s60 = sphi 0, %s46
    %s64 = sphi 0, %s64
    %s66 = sphi 0, %s64
    %s67 = sphi 0, %s66
    %s81 = sphi 0, %s67
    %s87 = sphi 0, %s89
    %s90 = sphi 0, %s87
    %s91 = sphi 0, %s90
    %s107 = sphi 0, %s91
  $region4: #{se_layer.1} parent=0 // loop_header_branch
    %12 = sbr.rel (%p10) target = $region8
  $region5: #{se_layer.1} parent=0 // loop_body
    %s14 = ssub.s32 %s9, 1
    %s15 = ssub.s32 %s9, 2
    %s16 = sadd.s32 %s9, 1
    %s17 = ssub.s32 %s9, %s16
    %p18 = scmp.eq.s32.totalorder %s17, 0
    %s20 = sadd.s32 %s19, 1
    %s21 = scalar_select %p18, %s19, %s20
    %p24 = pneg %p18
    %p25 = scmp.eq.s32.totalorder %s9, 1
    %p26 = por %p24, %p25
    %p27 = scmp.ne.s32.totalorder %s19, %s22
    %p28 = scmp.eq.s32.totalorder %s9, 0
    %p29 = por %p27, %p28
    %p30 = scmp.ne.s32.totalorder %s19, %s22
    %p31 = scmp.eq.s32.totalorder %s14, 1
    %p32 = por %p30, %p31
    %p33 = scmp.ne.s32.totalorder %s22, %s23
    %p34 = scmp.eq.s32.totalorder %s14, 0
    %p35 = por %p33, %p34
    %p36 = scmp.ne.s32.totalorder %s22, %s23
    %p37 = scmp.eq.s32.totalorder %s15, 1
    %p38 = por %p36, %p37
    %p40 = scmp.ne.s32.totalorder %s23, %s39
    %p41 = scmp.eq.s32.totalorder %s15, 0
    %p42 = por %p40, %p41
    %s44 = sadd.s32 %s43, 1
    %p47 = scmp.eq.s32.totalorder %s9, 1
    %p48 = scmp.ne.s32.totalorder %s43, %s45
    %p49 = scmp.eq.s32.totalorder %s9, 0
    %p50 = por %p48, %p49
    %p51 = scmp.ne.s32.totalorder %s43, %s45
    %p52 = scmp.eq.s32.totalorder %s14, 1
    %p53 = por %p51, %p52
    %p54 = scmp.ne.s32.totalorder %s45, %s46
    %p55 = scmp.eq.s32.totalorder %s14, 0
    %p56 = por %p54, %p55
    %p57 = scmp.ne.s32.totalorder %s45, %s46
    %p58 = scmp.eq.s32.totalorder %s15, 1
    %p59 = por %p57, %p58
    %p61 = scmp.ne.s32.totalorder %s46, %s60
    %p62 = scmp.eq.s32.totalorder %s15, 0
    %p63 = por %p61, %p62
    %s65 = sadd.s32 %s64, 1
    %p68 = scmp.eq.s32.totalorder %s9, 1
    %p69 = scmp.ne.s32.totalorder %s64, %s66
    %p70 = scmp.eq.s32.totalorder %s9, 0
    %p71 = por %p69, %p70
    %p72 = scmp.ne.s32.totalorder %s64, %s66
    %p73 = scmp.eq.s32.totalorder %s14, 1
    %p74 = por %p72, %p73
    %p75 = scmp.ne.s32.totalorder %s66, %s67
    %p76 = scmp.eq.s32.totalorder %s14, 0
    %p77 = por %p75, %p76
    %p78 = scmp.ne.s32.totalorder %s66, %s67
    %p79 = scmp.eq.s32.totalorder %s15, 1
    %p80 = por %p78, %p79
    %p82 = scmp.ne.s32.totalorder %s67, %s81
    %p83 = scmp.eq.s32.totalorder %s15, 0
    %p84 = por %p82, %p83
    %s85 = ssub.s32 %s9, %s16
    %p86 = scmp.eq.s32.totalorder %s85, 0
    %s88 = sadd.s32 %s87, 1
    %s89 = scalar_select %p86, %s87, %s88
    %p92 = pneg %p86
    %p93 = scmp.eq.s32.totalorder %s9, 1
    %p94 = por %p92, %p93
    %p95 = scmp.ne.s32.totalorder %s87, %s90
    %p96 = scmp.eq.s32.totalorder %s9, 0
    %p97 = por %p95, %p96
    %p98 = scmp.ne.s32.totalorder %s87, %s90
    %p99 = scmp.eq.s32.totalorder %s14, 1
    %p100 = por %p98, %p99
    %p101 = scmp.ne.s32.totalorder %s90, %s91
    %p102 = scmp.eq.s32.totalorder %s14, 0
    %p103 = por %p101, %p102
    %p104 = scmp.ne.s32.totalorder %s90, %s91
    %p105 = scmp.eq.s32.totalorder %s15, 1
    %p106 = por %p104, %p105
    %p108 = scmp.ne.s32.totalorder %s91, %s107
    %p109 = scmp.eq.s32.totalorder %s15, 0
    %p110 = por %p108, %p109
    %p111 = scmp.le.s32.totalorder 1, %s9
    %p112 = scmp.lt.s32.totalorder %s9, 3
    %p113 = pnand %p111, %p112
    %p114 = pneg %p113
    // Predicated region
    $region9: #{se_layer.1} parent=5 // pred_check
      _
    $region10: #{se_layer.1} parent=5 // pred_check_branch
      %116 = sbr.rel (%p113) target = $region12
    $region11: #{se_layer.1} parent=5 // pred_region
      %s117 = ssub.s32 %s9, 1
      // Predicated region
      $region13: #{se_layer.1} parent=11 // pred_check
        %p118 = pneg %p56
      $region14: #{se_layer.1} parent=11 // pred_check_branch
        %120 = sbr.rel (%p118) target = $region16
      $region15: #{se_layer.1} parent=11 // pred_region
        _
      $region16: #{se_layer.1} parent=11 // pred_fallthru
        _
      // Predicated region
      $region17: #{se_layer.1} parent=11 // pred_check
        %p121 = pneg %p77
      $region18: #{se_layer.1} parent=11 // pred_check_branch
        %123 = sbr.rel (%p121) target = $region20
      $region19: #{se_layer.1} parent=11 // pred_region
        _
      $region20: #{se_layer.1} parent=11 // pred_fallthru
        _
    $region12: #{se_layer.1} parent=5 // pred_fallthru
      _
    %p124 = scmp.lt.s32.totalorder %s9, 2
    // Predicated region
    $region21: #{se_layer.1} parent=5 // pred_check
      %p125 = pneg %p124
    $region22: #{se_layer.1} parent=5 // pred_check_branch
      %127 = sbr.rel (%p125) target = $region24
    $region23: #{se_layer.1} parent=5 // pred_region
      // Predicated region
      $region25: #{se_layer.1} parent=23 // pred_check
        %p128 = pneg %p29
      $region26: #{se_layer.1} parent=23 // pred_check_branch
        %130 = sbr.rel (%p128) target = $region28
      $region27: #{se_layer.1} parent=23 // pred_region
        %p131 = scmp.lt.s32.totalorder %s9, 1
        %s132 = scalar_select %p131, %s9, 1
        %s133 = smul.addr %s132, 2
        %s134 = smul.addr %s133, 4
        %s135 = scalar_lea.vmem %s0, %s134
      $region28: #{se_layer.1} parent=23 // pred_fallthru
        _
    $region24: #{se_layer.1} parent=5 // pred_fallthru
      _
    %p136 = scmp.le.s32.totalorder 1, %s9
    %p137 = scmp.lt.s32.totalorder %s9, 3
    %p138 = pnand %p136, %p137
    %p139 = pneg %p138
    // Predicated region
    $region29: #{se_layer.1} parent=5 // pred_check
      _
    $region30: #{se_layer.1} parent=5 // pred_check_branch
      %141 = sbr.rel (%p138) target = $region32
    $region31: #{se_layer.1} parent=5 // pred_region
      %s142 = ssub.s32 %s9, 1
      %p143 = scmp.lt.s32.totalorder %s14, 1
      %s144 = scalar_select %p143, %s14, 1
      %s145 = smul.addr %s144, 2
      %s146 = smul.addr %s145, 4
      %s147 = scalar_lea.vmem %s0, %s146
      %p148 = pneg %p35
      %p149 = pneg %p32
      %p150 = pneg %p56
      %p151 = pneg %p53
      %p152 = pneg %p77
      %p153 = pneg %p74
      %p154 = pneg %p103
      %p155 = pneg %p100
      %p156 = scmp.lt.s32.totalorder %s14, 1
      %s157 = scalar_select %p156, %s14, 1
      %s158 = smul.addr %s157, 2
      %s159 = smul.addr %s158, 4
      %s160 = scalar_lea.vmem %s3, %s159
      %p161 = scmp.lt.s32.totalorder %s14, 1
      %s162 = scalar_select %p161, %s14, 1
      %s163 = smul.addr %s162, 2
      %s164 = smul.addr %s163, 4
      %s165 = scalar_lea.vmem %s0, %s164
      %p166 = scmp.lt.s32.totalorder %s14, 1
      %s167 = scalar_select %p166, %s14, 1
      %s168 = smul.addr %s167, 2
      %s169 = smul.addr %s168, 4
      %s170 = scalar_lea.vmem %s3, %s169
      %v171 = vld [vmem:[%s165] sm:$0xff]
      %v173 = vcombine.high %v171, %v171
      %vm175 = vcmask 1043456
      %v176 = vsel %vm175, %v171, 0.0
      %v177 = vsel %vm175, %v173, 0.0
      %v178 = vadd.f32 %v176, %v177
      %179 = vadd.xlane.f32.xlu0 %v178
      %v180 = vpop.xlane.xlu0 %179
      %v181 = vmul.f32 %v180, 0.00390625
      %v182 = vld [vmem:[%s1] sm:$0xf]
      %v184 = vlaneseq
      %v185 = vand.u32 %v184, 127
      %v186 = vlaneseq
      %v187 = vshrl.u32 %v186, 7
      %v188 = vsub.s32 %v185, %v187
      %v189 = vrot.slane %v181, %v188
      %vm190 = vcmask 31744
      %v191 = vsel %vm190, %v189, 0
      %v194 = vsel %vm175, %v182, 0
      %196 = vmatprep.subr.mxu0 0.0
      %197 = vmatpush1.msra.mxu0 0.0
      %198 = vmatprep.subr.mxu0 0.0
      %199 = vmatpush1.msra.mxu0 0.0
      %200 = vmatprep.subr.mxu0 0.0
      %201 = vmatpush1.msra.mxu0 0.0
      %202 = vmatprep.subr.mxu0 0.0
      %203 = vmatpush1.msra.mxu0 0.0
      %204 = vmatprep.subr.mxu0 0.0
      %205 = vmatpush1.msra.mxu0 0.0
      %206 = vmatprep.subr.mxu0 0.0
      %207 = vmatpush1.msra.mxu0 0.0
      %208 = vmatprep.subr.mxu0 0.0
      %209 = vmatpush1.msra.mxu0 0.0
      %210 = vmatprep.subr.mxu0 0.0
      %211 = vmatpush1.msra.mxu0 0.0
      %212 = vmatprep.subr.mxu0 0.0
      %213 = vmatpush1.msra.mxu0 0.0
      %214 = vmatprep.subr.mxu0 0.0
      %215 = vmatpush1.msra.mxu0 0.0
      %216 = vmatprep.subr.mxu0 0.0
      %217 = vmatpush1.msra.mxu0 0.0
      %218 = vmatprep.subr.mxu0 0.0
      %219 = vmatpush1.msra.mxu0 0.0
      %220 = vmatprep.subr.mxu0 0.0
      %221 = vmatpush1.msra.mxu0 0.0
      %222 = vmatprep.subr.mxu0 0.0
      %223 = vmatpush1.msra.mxu0 0.0
      %224 = vmatprep.subr.mxu0 0.0
      %225 = vmatpush1.msra.mxu0 0.0
      %226 = vmatprep.subr.mxu0 0.0
      %227 = vmatpush1.msra.mxu0 %v194
      %228 = vmatprep.subr.mxu0 0.0
      %229 = vmatpush2.msra.mxu0 0.0
      %230 = vmatprep.subr.mxu0 0.0
      %231 = vmatpush2.msra.mxu0 0.0
      %232 = vmatprep.subr.mxu0 0.0
      %233 = vmatpush2.msra.mxu0 0.0
      %234 = vmatprep.subr.mxu0 0.0
      %235 = vmatpush2.msra.mxu0 0.0
      %236 = vmatprep.subr.mxu0 0.0
      %237 = vmatpush2.msra.mxu0 0.0
      %238 = vmatprep.subr.mxu0 0.0
      %239 = vmatpush2.msra.mxu0 0.0
      %240 = vmatprep.subr.mxu0 0.0
      %241 = vmatpush2.msra.mxu0 0.0
      %242 = vmatprep.subr.mxu0 0.0
      %243 = vmatpush2.msra.mxu0 0.0
      %244 = vmatprep.subr.mxu0 0.0
      %245 = vmatpush2.msra.mxu0 0.0
      %246 = vmatprep.subr.mxu0 0.0
      %247 = vmatpush2.msra.mxu0 0.0
      %248 = vmatprep.subr.mxu0 0.0
      %249 = vmatpush2.msra.mxu0 0.0
      %250 = vmatprep.subr.mxu0 0.0
      %251 = vmatpush2.msra.mxu0 0.0
      %252 = vmatprep.subr.mxu0 0.0
      %253 = vmatpush2.msra.mxu0 0.0
      %254 = vmatprep.subr.mxu0 0.0
      %255 = vmatpush2.msra.mxu0 0.0
      %256 = vmatprep.subr.mxu0 0.0
      %257 = vmatpush2.msra.mxu0 0.0
      %258 = vmatprep.subr.mxu0 0.0
      %259 = vmatpush2.msra.mxu0 0.0
      %260 = vmatprep.mubr.f32.mxu0 0.0
      %261 = vmatmul.mubr.f32.gmra.mxu0 %v191
      %v262 = vpop.f32.mrf.mxu0
      %v263 = vadd.f32 0.0, %v262
      %v264 = vpop.f32.mrf.mxu0
      %265 = vdwg.mxu0
      %v266 = vmax.f32 %v263, 0.0
      %v267 = vld [vmem:[%s2] sm:$0x3]
      %vm268 = vcmask 15360
      %v270 = vsel %vm268, %v266, 0
      %vm272 = vcmask 1041408
      %v274 = vsel %vm272, %v267, 0
      %276 = vmatprep.subr.mxu0 0.0
      %277 = vmatpush1.msra.mxu0 0.0
      %278 = vmatprep.subr.mxu0 0.0
      %279 = vmatpush1.msra.mxu0 0.0
      %280 = vmatprep.subr.mxu0 0.0
      %281 = vmatpush1.msra.mxu0 0.0
      %282 = vmatprep.subr.mxu0 0.0
      %283 = vmatpush1.msra.mxu0 0.0
      %284 = vmatprep.subr.mxu0 0.0
      %285 = vmatpush1.msra.mxu0 0.0
      %286 = vmatprep.subr.mxu0 0.0
      %287 = vmatpush1.msra.mxu0 0.0
      %288 = vmatprep.subr.mxu0 0.0
      %289 = vmatpush1.msra.mxu0 0.0
      %290 = vmatprep.subr.mxu0 0.0
      %291 = vmatpush1.msra.mxu0 0.0
      %292 = vmatprep.subr.mxu0 0.0
      %293 = vmatpush1.msra.mxu0 0.0
      %294 = vmatprep.subr.mxu0 0.0
      %295 = vmatpush1.msra.mxu0 0.0
      %296 = vmatprep.subr.mxu0 0.0
      %297 = vmatpush1.msra.mxu0 0.0
      %298 = vmatprep.subr.mxu0 0.0
      %299 = vmatpush1.msra.mxu0 0.0
      %300 = vmatprep.subr.mxu0 0.0
      %301 = vmatpush1.msra.mxu0 0.0
      %302 = vmatprep.subr.mxu0 0.0
      %303 = vmatpush1.msra.mxu0 0.0
      %304 = vmatprep.subr.mxu0 0.0
      %305 = vmatpush1.msra.mxu0 0.0
      %306 = vmatprep.subr.mxu0 0.0
      %307 = vmatpush1.msra.mxu0 %v274
      %308 = vmatprep.subr.mxu0 0.0
      %309 = vmatpush2.msra.mxu0 0.0
      %310 = vmatprep.subr.mxu0 0.0
      %311 = vmatpush2.msra.mxu0 0.0
      %312 = vmatprep.subr.mxu0 0.0
      %313 = vmatpush2.msra.mxu0 0.0
      %314 = vmatprep.subr.mxu0 0.0
      %315 = vmatpush2.msra.mxu0 0.0
      %316 = vmatprep.subr.mxu0 0.0
      %317 = vmatpush2.msra.mxu0 0.0
      %318 = vmatprep.subr.mxu0 0.0
      %319 = vmatpush2.msra.mxu0 0.0
      %320 = vmatprep.subr.mxu0 0.0
      %321 = vmatpush2.msra.mxu0 0.0
      %322 = vmatprep.subr.mxu0 0.0
      %323 = vmatpush2.msra.mxu0 0.0
      %324 = vmatprep.subr.mxu0 0.0
      %325 = vmatpush2.msra.mxu0 0.0
      %326 = vmatprep.subr.mxu0 0.0
      %327 = vmatpush2.msra.mxu0 0.0
      %328 = vmatprep.subr.mxu0 0.0
      %329 = vmatpush2.msra.mxu0 0.0
      %330 = vmatprep.subr.mxu0 0.0
      %331 = vmatpush2.msra.mxu0 0.0
      %332 = vmatprep.subr.mxu0 0.0
      %333 = vmatpush2.msra.mxu0 0.0
      %334 = vmatprep.subr.mxu0 0.0
      %335 = vmatpush2.msra.mxu0 0.0
      %336 = vmatprep.subr.mxu0 0.0
      %337 = vmatpush2.msra.mxu0 0.0
      %338 = vmatprep.subr.mxu0 0.0
      %339 = vmatpush2.msra.mxu0 0.0
      %340 = vmatprep.mubr.f32.mxu0 0.0
      %341 = vmatmul.mubr.f32.gmra.mxu0 %v270
      %v342 = vpop.f32.mrf.mxu0
      %v343 = vadd.f32 0.0, %v342
      %v344 = vpop.f32.mrf.mxu0
      %345 = vdwg.mxu0
      %v346 = vxor.u32 %v343, 2147483648
      %v347 = vmul.f32 %v346, 1.442695
      %v348 = vpow.pop %v347
      %v349 = vadd.f32 %v348, 1.0
      %v350 = vrcp.pop %v349
      %v351 = vmul.f32 1.0, %v350
      %v352 = vadd.f32 %v351, 1.0
      %v353 = vlaneseq
      %v354 = vshrl.u32 %v353, 7
      %v355 = vsub.s32 0, %v354
      %v356 = vrot.slane %v352, %v355
      %358 = vbcast.lane.b32.xlu0 %v356, 256
      %v359 = vpop.permute.xlu0 %358
      %v362 = vunpack.c.l.s4 839922192
      %v363 = vunpack.c.0.s8 %v362
      %v364 = vlaneseq
      %v365 = vshrl.u32 %v364, 7
      %v366 = vsub.s32 %v363, %v365
      %v367 = vrot.slane %v359, %v366
      %v369 = vmul.f32 %v171, %v367
      %370 = vst [vmem:[%s170] sm:$0xff] %v369
      %p371 = scmp.lt.s32.totalorder %s14, 1
      %s372 = scalar_select %p371, %s14, 1
      %s373 = smul.addr %s372, 2
      %s374 = smul.addr %s373, 4
      %s375 = scalar_lea.vmem %s3, %s374
      // Predicated region
      $region33: #{se_layer.1} parent=31 // pred_check
        %p376 = pneg %p100
      $region34: #{se_layer.1} parent=31 // pred_check_branch
        %378 = sbr.rel (%p376) target = $region36
      $region35: #{se_layer.1} parent=31 // pred_region
        _
      $region36: #{se_layer.1} parent=31 // pred_fallthru
        _
    $region32: #{se_layer.1} parent=5 // pred_fallthru
      _
    %p379 = scmp.le.s32.totalorder 2, %s9
    // Predicated region
    $region37: #{se_layer.1} parent=5 // pred_check
      %p380 = pneg %p379
    $region38: #{se_layer.1} parent=5 // pred_check_branch
      %382 = sbr.rel (%p380) target = $region40
    $region39: #{se_layer.1} parent=5 // pred_region
      %s383 = ssub.s32 %s9, 2
      // Predicated region
      $region41: #{se_layer.1} parent=39 // pred_check
        %p384 = pneg %p106
      $region42: #{se_layer.1} parent=39 // pred_check_branch
        %386 = sbr.rel (%p384) target = $region44
      $region43: #{se_layer.1} parent=39 // pred_region
        %p387 = scmp.lt.s32.totalorder %s15, 1
        %s388 = scalar_select %p387, %s15, 1
        %s389 = smul.addr %s388, 2
        %s390 = smul.addr %s389, 4
        %s391 = scalar_lea.vmem %s3, %s390
      $region44: #{se_layer.1} parent=39 // pred_fallthru
        _
    $region40: #{se_layer.1} parent=5 // pred_fallthru
      _
  $region6: #{se_layer.1} parent=0 // loop_footer
    %s13 = sadd.s32 1, %s9
  $region7: #{se_layer.1} parent=0 // loop_footer_branch
    %8 = sbr.rel target = $region3
  $region8: #{se_layer.1} parent=0 // loop_exit
    _

</llo_original>
